<compile_context>
chip_gen: v5e
topology: v5e:2x2
jax: 0.10.0
libtpu: 0.0.40
codegen_flags: <defaults>
</compile_context>

<pallas_src>
import functools
import math

import jax
import jax.numpy as jnp
from jax.experimental import pallas as pl
from jax.experimental.pallas import tpu as pltpu


def _round_up(x, m):
    return ((x + m - 1) // m) * m


# --------------------------------------------------------------------------
# Fast path: the whole key axis fits in a single kv tile -> one-pass softmax.
# --------------------------------------------------------------------------
def _attn_single_kv_kernel(k_ref, v_ref, q_ref, o_ref, *, scale, lk_valid,
                           lk_padded):
    # Fold 1/sqrt(D) into Q: touches tq*D elements instead of tq*Lk scores.
    q = q_ref[...] * scale                                    # (tq, Dp)

    # S = Q @ K^T without materializing a transpose: contract last dims.
    s = jax.lax.dot_general(
        q, k_ref[...], (((1,), (1,)), ((), ())),
        preferred_element_type=jnp.float32)                   # (tq, Lk_p) f32

    if lk_padded != lk_valid:
        key_idx = jax.lax.broadcasted_iota(jnp.int32, s.shape, 1)
        s = jnp.where(key_idx < lk_valid, s, -jnp.inf)

    m = jnp.max(s, axis=-1, keepdims=True)                    # (tq, 1)
    p = jnp.exp(s - m)                                        # (tq, Lk_p)
    l = jnp.sum(p, axis=-1, keepdims=True)                    # (tq, 1)
    inv_l = pl.reciprocal(l, approx=True)                     # EUP vrcp

    out = jnp.dot(p.astype(v_ref.dtype), v_ref[...],
                  preferred_element_type=jnp.float32)         # (tq, Dv_p)
    o_ref[...] = (out * inv_l).astype(o_ref.dtype)


# --------------------------------------------------------------------------
# Flash path: online softmax across kv tiles (reduction grid axis last).
# --------------------------------------------------------------------------
def _flash_attn_kernel(k_ref, v_ref, q_ref, o_ref, m_sc, l_sc, acc_sc,
                       *, scale, block_k, lk_valid, lk_padded):
    """One (batch, q-tile) accumulates over the kv grid axis (axis 2)."""
    kv = pl.program_id(2)

    @pl.when(kv == 0)
    def _init():
        m_sc[...] = jnp.full_like(m_sc, -jnp.inf)
        l_sc[...] = jnp.zeros_like(l_sc)
        acc_sc[...] = jnp.zeros_like(acc_sc)

    q = q_ref[...] * scale                                    # (tq, Dp)

    s = jax.lax.dot_general(
        q, k_ref[...], (((1,), (1,)), ((), ())),
        preferred_element_type=jnp.float32)                   # (tq, tk) f32

    # Mask padded key positions (only traced when padding exists).
    if lk_padded != lk_valid:
        key_idx = kv * block_k + jax.lax.broadcasted_iota(jnp.int32, s.shape, 1)
        s = jnp.where(key_idx < lk_valid, s, -jnp.inf)

    # Online-softmax update.
    m_prev = m_sc[...]
    m_new = jnp.maximum(m_prev, jnp.max(s, axis=-1, keepdims=True))
    alpha = jnp.exp(m_prev - m_new)
    p = jnp.exp(s - m_new)

    l_sc[...] = alpha * l_sc[...] + jnp.sum(p, axis=-1, keepdims=True)
    acc_sc[...] = alpha * acc_sc[...] + jnp.dot(
        p.astype(v_ref.dtype), v_ref[...], preferred_element_type=jnp.float32)
    m_sc[...] = m_new

    @pl.when(kv == pl.num_programs(2) - 1)
    def _finalize():
        inv_l = pl.reciprocal(l_sc[...], approx=True)         # EUP vrcp
        o_ref[...] = (acc_sc[...] * inv_l).astype(o_ref.dtype)


def scaled_dot_attention(K, V, Q, *, block_q=256, block_k=512):
    """K: (B, Lk, D), V: (B, Lk, Dv), Q: (B, Lq, D) -> (B, Lq, Dv)."""
    B, Lk, D = K.shape
    Bv, Lkv, Dv = V.shape
    Bq, Lq, Dq = Q.shape
    assert Dq == D, "Q and K must share the feature dimension"
    assert Bv == B and Bq == B and Lkv == Lk

    scale = 1.0 / math.sqrt(D)

    # Tile sizes: clamp to (8-aligned) sequence lengths so tiny shapes do not
    # over-pad; large shapes get 256/512 tiles (MXU / lane friendly).
    tq = min(block_q, _round_up(Lq, 8))
    tk = min(block_k, _round_up(Lk, 8))

    # Pad sequence dims to tile multiples and feature dims to 128 (lane-dense
    # tiles and an unmasked, lane-dense output store).
    Lq_p = _round_up(Lq, tq)
    Lk_p = _round_up(Lk, tk)
    D_p = _round_up(D, 128)
    Dv_p = _round_up(Dv, 128)

    def _pad3(x, seq_target, feat_target):
        ps, pf = seq_target - x.shape[1], feat_target - x.shape[2]
        if ps == 0 and pf == 0:
            return x
        return jnp.pad(x, ((0, 0), (0, ps), (0, pf)))

    Kp = _pad3(K, Lk_p, D_p)
    Vp = _pad3(V, Lk_p, Dv_p)
    Qp = _pad3(Q, Lq_p, D_p)

    grid_q = Lq_p // tq
    grid_k = Lk_p // tk

    itemsize = jnp.dtype(Q.dtype).itemsize
    cost = pl.CostEstimate(
        flops=2 * B * Lq_p * Lk_p * (D_p + Dv_p),
        transcendentals=B * Lq_p * Lk_p,
        bytes_accessed=(Kp.size + Vp.size + Qp.size + B * Lq_p * Dv_p) * itemsize,
    )

    if grid_k == 1:
        # ---------------- single kv block: one-pass softmax ----------------
        kernel = functools.partial(
            _attn_single_kv_kernel,
            scale=scale, lk_valid=Lk, lk_padded=Lk_p)

        out_p = pl.pallas_call(
            kernel,
            out_shape=jax.ShapeDtypeStruct((B, Lq_p, Dv_p), Q.dtype),
            grid_spec=pltpu.PrefetchScalarGridSpec(
                num_scalar_prefetch=0,
                grid=(B, grid_q),
                in_specs=[
                    pl.BlockSpec((None, Lk_p, D_p), lambda b, qi: (b, 0, 0)),   # K
                    pl.BlockSpec((None, Lk_p, Dv_p), lambda b, qi: (b, 0, 0)),  # V
                    pl.BlockSpec((None, tq, D_p), lambda b, qi: (b, qi, 0)),    # Q
                ],
                out_specs=pl.BlockSpec((None, tq, Dv_p), lambda b, qi: (b, qi, 0)),
            ),
            compiler_params=pltpu.CompilerParams(
                dimension_semantics=("parallel", "parallel"),
                vmem_limit_bytes=32 * 1024 * 1024,
            ),
            cost_estimate=cost,
        )(Kp, Vp, Qp)
    else:
        # ---------------- multi kv block: flash / online softmax -----------
        kernel = functools.partial(
            _flash_attn_kernel,
            scale=scale, block_k=tk, lk_valid=Lk, lk_padded=Lk_p)

        out_p = pl.pallas_call(
            kernel,
            out_shape=jax.ShapeDtypeStruct((B, Lq_p, Dv_p), Q.dtype),
            grid_spec=pltpu.PrefetchScalarGridSpec(
                num_scalar_prefetch=0,
                grid=(B, grid_q, grid_k),
                in_specs=[
                    pl.BlockSpec((None, tk, D_p), lambda b, qi, ki: (b, ki, 0)),   # K
                    pl.BlockSpec((None, tk, Dv_p), lambda b, qi, ki: (b, ki, 0)),  # V
                    pl.BlockSpec((None, tq, D_p), lambda b, qi, ki: (b, qi, 0)),   # Q
                ],
                out_specs=pl.BlockSpec((None, tq, Dv_p), lambda b, qi, ki: (b, qi, 0)),
                scratch_shapes=[
                    pltpu.VMEM((tq, 1), jnp.float32),     # running max  m
                    pltpu.VMEM((tq, 1), jnp.float32),     # running sum  l
                    pltpu.VMEM((tq, Dv_p), jnp.float32),  # f32 output accumulator
                ],
            ),
            compiler_params=pltpu.CompilerParams(
                dimension_semantics=("parallel", "parallel", "arbitrary"),
                vmem_limit_bytes=32 * 1024 * 1024,
            ),
            cost_estimate=cost,
        )(Kp, Vp, Qp)

    # Strip sequence / feature padding.
    return out_p[:, :Lq, :Dv]


def _reference(K, V, Q):
    d = Q.shape[-1]
    s = jnp.einsum("bqd,bkd->bqk", Q, K) / jnp.sqrt(jnp.float32(d))
    p = jax.nn.softmax(s, axis=2)
    return jnp.einsum("bqk,bkv->bqv", p, V)


if __name__ == "__main__":
    key = jax.random.PRNGKey(0)
    kK, kV, kQ = jax.random.split(key, 3)

    # Primary (module-implied small shapes) -> exercises the single-kv fast path.
    B, Lq, Lk, D = 2, 8, 8, 32
    K = jax.random.normal(kK, (B, Lk, D), dtype=jnp.float32)
    V = jax.random.normal(kV, (B, Lk, D), dtype=jnp.float32)
    Q = jax.random.normal(kQ, (B, Lq, D), dtype=jnp.float32)

    out = scaled_dot_attention(K, V, Q)
    jax.block_until_ready(out)

    ref = _reference(K, V, Q)
    assert out.shape == (B, Lq, D)
    # approx reciprocal (EUP) in the normalize step -> attention-level tolerance
    assert jnp.allclose(out, ref, atol=2e-3, rtol=2e-3), "mismatch vs reference"

    # Secondary check: force the multi-block flash path (padding + masking).
    B2, Lq2, Lk2, D2 = 2, 64, 200, 32
    k2, v2, q2 = jax.random.split(jax.random.PRNGKey(0), 3)
    K2 = jax.random.normal(k2, (B2, Lk2, D2), dtype=jnp.float32)
    V2 = jax.random.normal(v2, (B2, Lk2, D2), dtype=jnp.float32)
    Q2 = jax.random.normal(q2, (B2, Lq2, D2), dtype=jnp.float32)

    out2 = scaled_dot_attention(K2, V2, Q2, block_q=64, block_k=128)
    jax.block_until_ready(out2)
    ref2 = _reference(K2, V2, Q2)
    assert out2.shape == (B2, Lq2, D2)
    assert jnp.allclose(out2, ref2, atol=2e-3, rtol=2e-3), "flash-path mismatch"

    print("KERNEL_OK")
</pallas_src>

<mosaic_0001>
module attributes {stable_mosaic.version = 11 : i64} {
  func.func @_attn_single_kv_kernel(%arg0: i32, %arg1: i32, %arg2: memref<1x8x128xf32, #tpu.memory_space<vmem>>, %arg3: memref<1x8x128xf32, #tpu.memory_space<vmem>>, %arg4: memref<1x8x128xf32, #tpu.memory_space<vmem>>, %arg5: memref<1x8x128xf32, #tpu.memory_space<vmem>>) attributes {dimension_semantics = [#tpu.dimension_semantics<parallel>, #tpu.dimension_semantics<parallel>], iteration_bounds = array<i64: 2, 1>, scalar_prefetch = 0 : i64, scratch_operands = 0 : i64, tpu.core_type = #tpu.core_type<tc>, window_params = [{transform_indices = @transform_0, window_bounds = array<i64: 1, 8, 128>}, {transform_indices = @transform_1, window_bounds = array<i64: 1, 8, 128>}, {transform_indices = @transform_2, window_bounds = array<i64: 1, 8, 128>}, {transform_indices = @transform_3, window_bounds = array<i64: 1, 8, 128>}]} {
    %c0 = arith.constant 0 : index
    %c0_0 = arith.constant 0 : index
    %c0_1 = arith.constant 0 : index
    %0 = vector.load %arg4[%c0, %c0_0, %c0_1] : memref<1x8x128xf32, #tpu.memory_space<vmem>>, vector<1x8x128xf32>
    %1 = vector.shape_cast %0 : vector<1x8x128xf32> to vector<8x128xf32>
    %cst = arith.constant 0.176776692 : f32
    %2 = vector.broadcast %cst : f32 to vector<8x128xf32>
    %3 = arith.mulf %1, %2 : vector<8x128xf32>
    %c0_2 = arith.constant 0 : index
    %c0_3 = arith.constant 0 : index
    %c0_4 = arith.constant 0 : index
    %4 = vector.load %arg2[%c0_2, %c0_3, %c0_4] : memref<1x8x128xf32, #tpu.memory_space<vmem>>, vector<1x8x128xf32>
    %5 = vector.shape_cast %4 : vector<1x8x128xf32> to vector<8x128xf32>
    %cst_5 = arith.constant dense<0.000000e+00> : vector<8x8xf32>
    %6 = tpu.matmul %3, %5, %cst_5 {dimension_numbers = #tpu.dot_dimension_numbers<[1], [1], [0], [0], [0, 0, 1, 0], [], []>} : vector<8x128xf32>, vector<8x128xf32>, vector<8x8xf32> -> vector<8x8xf32>
    %cst_6 = arith.constant dense<0xFF800000> : vector<8xf32>
    %7 = vector.multi_reduction <maximumf>, %6, %cst_6 [1] : vector<8x8xf32> to vector<8xf32>
    %8 = vector.shape_cast %7 : vector<8xf32> to vector<8x1xf32>
    %9 = vector.broadcast %8 : vector<8x1xf32> to vector<8x8xf32>
    %10 = arith.subf %6, %9 : vector<8x8xf32>
    %11 = math.exp %10 : vector<8x8xf32>
    %cst_7 = arith.constant dense<0.000000e+00> : vector<8xf32>
    %12 = vector.multi_reduction <add>, %11, %cst_7 [1] : vector<8x8xf32> to vector<8xf32>
    %13 = vector.shape_cast %12 : vector<8xf32> to vector<8x1xf32>
    %14 = tpu.reciprocal %13 {approx = true} : vector<8x1xf32> -> vector<8x1xf32>
    %c0_8 = arith.constant 0 : index
    %c0_9 = arith.constant 0 : index
    %c0_10 = arith.constant 0 : index
    %15 = vector.load %arg3[%c0_8, %c0_9, %c0_10] : memref<1x8x128xf32, #tpu.memory_space<vmem>>, vector<1x8x128xf32>
    %16 = vector.shape_cast %15 : vector<1x8x128xf32> to vector<8x128xf32>
    %cst_11 = arith.constant dense<0.000000e+00> : vector<8x128xf32>
    %17 = tpu.matmul %11, %16, %cst_11 {dimension_numbers = #tpu.dot_dimension_numbers<[1], [0], [0], [1], [0, 0, 1, 1], [], []>} : vector<8x8xf32>, vector<8x128xf32>, vector<8x128xf32> -> vector<8x128xf32>
    %18 = vector.broadcast %14 : vector<8x1xf32> to vector<8x128xf32>
    %19 = arith.mulf %17, %18 : vector<8x128xf32>
    %c0_12 = arith.constant 0 : index
    %c0_13 = arith.constant 0 : index
    %c0_14 = arith.constant 0 : index
    %20 = vector.load %arg5[%c0_12, %c0_13, %c0_14] : memref<1x8x128xf32, #tpu.memory_space<vmem>>, vector<1x8x128xf32>
    %21 = vector.shape_cast %20 : vector<1x8x128xf32> to vector<8x128xf32>
    %22 = vector.shape_cast %19 : vector<8x128xf32> to vector<1x8x128xf32>
    tpu.vector_store %arg5[%c0_12, %c0_13, %c0_14], %22 {strides = array<i32>} : memref<1x8x128xf32, #tpu.memory_space<vmem>>, vector<1x8x128xf32>,
    return
  }
  func.func @transform_0(%arg0: i32, %arg1: i32) -> (i32, i32, i32) {
    %c0_i32 = arith.constant 0 : i32
    %c0_i32_0 = arith.constant 0 : i32
    %c0_i32_1 = arith.constant 0 : i32
    return %arg0, %c0_i32, %c0_i32_0 : i32, i32, i32
  }
  func.func @transform_1(%arg0: i32, %arg1: i32) -> (i32, i32, i32) {
    %c0_i32 = arith.constant 0 : i32
    %c0_i32_0 = arith.constant 0 : i32
    %c0_i32_1 = arith.constant 0 : i32
    return %arg0, %c0_i32, %c0_i32_0 : i32, i32, i32
  }
  func.func @transform_2(%arg0: i32, %arg1: i32) -> (i32, i32, i32) {
    %c0_i32 = arith.constant 0 : i32
    %c0_i32_0 = arith.constant 0 : i32
    return %arg0, %arg1, %c0_i32 : i32, i32, i32
  }
  func.func @transform_3(%arg0: i32, %arg1: i32) -> (i32, i32, i32) {
    %c0_i32 = arith.constant 0 : i32
    %c0_i32_0 = arith.constant 0 : i32
    return %arg0, %arg1, %c0_i32 : i32, i32, i32
  }
}

</mosaic_0001>

<llo_original>
// kernel: tpu_custom_call.1
$region0: #{tpu_custom_call.1}
  #allocation0 [shape = 'u32[]', space=smem, size = 0x4, offset = 0x4, fixed_abs, tag = 'smem constant byte address 0x4 - core index']
  #allocation1 [shape = 'u32[72,128]{1,0:T(1,128)}', space=vmem, size = 0x9000, scoped, tag = 'internal scratch']
  %s0 = inlined_call_operand.hbm [shape: f32[2,8,128], index: 0, kind: input, shape index: {}]
  %s1 = inlined_call_operand.hbm [shape: f32[2,8,128], index: 1, kind: input, shape index: {}]
  %s2 = inlined_call_operand.hbm [shape: f32[2,8,128], index: 2, kind: input, shape index: {}]
  %s3 = inlined_call_operand.hbm [shape: f32[2,8,128], index: 3, kind: output, shape index: {}]
  %s4 = sld [smem:[#allocation0]]
  $region57: #{tpu_custom_call.1} parent=0
    _
  %s6 = ssub.s32 1, %s4
  %s7 = scalar_select 0, %s6, %s4
  $region1: #{tpu_custom_call.1} parent=0
    #allocation2 [shape = 'u8[8192]{0}', space=vmem, size = 0x2000, scoped, tag = 'input window, operand 0']
    #allocation3 [shape = 's32[2]{0}', space=sflag, size = 0x8, scoped, tag = 'scoped memory for tpu_custom_call.1']
    #allocation4 [shape = 's32[2]{0}', space=sflag, size = 0x8, scoped, tag = 'scoped memory for tpu_custom_call.1']
    #allocation5 [shape = 'u8[8192]{0}', space=vmem, size = 0x2000, scoped, tag = 'input window, operand 1']
    #allocation6 [shape = 's32[2]{0}', space=sflag, size = 0x8, scoped, tag = 'scoped memory for tpu_custom_call.1']
    #allocation7 [shape = 'u8[8192]{0}', space=vmem, size = 0x2000, scoped, tag = 'input window, operand 2']
    #allocation8 [shape = 'u8[8192]{0}', space=vmem, size = 0x2000, scoped, tag = 'output window, operand 0']
    %8 = vsyncpa [#allocation3], 0
    %s9 = scalar_lea.sflag [#allocation3], 1
    %10 = vsyncpa %s9, 0
    %11 = vsyncpa [#allocation6], 0
    %s12 = scalar_lea.sflag [#allocation6], 1
    %13 = vsyncpa %s12, 0
    %14 = vsyncpa [#allocation4], 0
    %s15 = scalar_lea.sflag [#allocation4], 1
    %16 = vsyncpa %s15, 0
    loop: start=0, step=1, limit=4
    $region2: #{tpu_custom_call.1} parent=1 // loop_pre_header
      _
    $region3: #{tpu_custom_call.1} parent=1 // loop_header
      %s18 = sphi 0, %s22
      %p19 = scmp.ge.s32.totalorder %s18, 4
      %s25 = sphi 0, %s37
      %s26 = sphi 0, %s33
      %s27 = sphi 0, %s25
      %s28 = sphi 0, %s26
      %s29 = sphi 0, %s27
      %s30 = sphi 0, %s28
      %s40 = sphi 0, %s42
      %s43 = sphi 0, %s40
      %s44 = sphi 0, %s43
      %s60 = sphi 0, %s44
      %s66 = sphi 0, %s68
      %s69 = sphi 0, %s66
      %s70 = sphi 0, %s69
      %s86 = sphi 0, %s70
      %s94 = sphi 0, %s96
      %s97 = sphi 0, %s94
      %s98 = sphi 0, %s97
      %s114 = sphi 0, %s98
      %s122 = sphi 0, %s124
      %s125 = sphi 0, %s122
      %s126 = sphi 0, %s125
      %s142 = sphi 0, %s126
    $region4: #{tpu_custom_call.1} parent=1 // loop_header_branch
      %21 = sbr.rel (%p19) target = $region8
    $region5: #{tpu_custom_call.1} parent=1 // loop_body
      %s23 = ssub.s32 %s18, 1
      %s24 = ssub.s32 %s18, 2
      %s31 = sadd.s32 1, %s26
      %p32 = scmp.ge.s32.totalorder %s31, 1
      %s33 = scalar_select %p32, 0, %s31
      %s34 = sadd.s32 1, %s25
      %s35 = scalar_select %p32, %s34, %s25
      %p36 = scmp.ge.s32.totalorder %s35, 2
      %s37 = scalar_select %p36, 0, %s35
      %s38 = ssub.s32 %s25, %s37
      %p39 = scmp.eq.s32.totalorder %s38, 0
      %s41 = sadd.s32 %s40, 1
      %s42 = scalar_select %p39, %s40, %s41
      %p45 = pneg %p39
      %p46 = scmp.eq.s32.totalorder %s18, 1
      %p47 = por %p45, %p46
      %p48 = scmp.ne.s32.totalorder %s40, %s43
      %p49 = scmp.eq.s32.totalorder %s18, 0
      %p50 = por %p48, %p49
      %p51 = scmp.ne.s32.totalorder %s40, %s43
      %p52 = scmp.eq.s32.totalorder %s23, 1
      %p53 = por %p51, %p52
      %p54 = scmp.ne.s32.totalorder %s43, %s44
      %p55 = scmp.eq.s32.totalorder %s23, 0
      %p56 = por %p54, %p55
      %p57 = scmp.ne.s32.totalorder %s43, %s44
      %p58 = scmp.eq.s32.totalorder %s24, 1
      %p59 = por %p57, %p58
      %p61 = scmp.ne.s32.totalorder %s44, %s60
      %p62 = scmp.eq.s32.totalorder %s24, 0
      %p63 = por %p61, %p62
      %s64 = ssub.s32 %s25, %s37
      %p65 = scmp.eq.s32.totalorder %s64, 0
      %s67 = sadd.s32 %s66, 1
      %s68 = scalar_select %p65, %s66, %s67
      %p71 = pneg %p65
      %p72 = scmp.eq.s32.totalorder %s18, 1
      %p73 = por %p71, %p72
      %p74 = scmp.ne.s32.totalorder %s66, %s69
      %p75 = scmp.eq.s32.totalorder %s18, 0
      %p76 = por %p74, %p75
      %p77 = scmp.ne.s32.totalorder %s66, %s69
      %p78 = scmp.eq.s32.totalorder %s23, 1
      %p79 = por %p77, %p78
      %p80 = scmp.ne.s32.totalorder %s69, %s70
      %p81 = scmp.eq.s32.totalorder %s23, 0
      %p82 = por %p80, %p81
      %p83 = scmp.ne.s32.totalorder %s69, %s70
      %p84 = scmp.eq.s32.totalorder %s24, 1
      %p85 = por %p83, %p84
      %p87 = scmp.ne.s32.totalorder %s70, %s86
      %p88 = scmp.eq.s32.totalorder %s24, 0
      %p89 = por %p87, %p88
      %s90 = ssub.s32 %s25, %s37
      %s91 = ssub.s32 %s26, %s33
      %s92 = sor.u32 %s90, %s91
      %p93 = scmp.eq.s32.totalorder %s92, 0
      %s95 = sadd.s32 %s94, 1
      %s96 = scalar_select %p93, %s94, %s95
      %p99 = pneg %p93
      %p100 = scmp.eq.s32.totalorder %s18, 1
      %p101 = por %p99, %p100
      %p102 = scmp.ne.s32.totalorder %s94, %s97
      %p103 = scmp.eq.s32.totalorder %s18, 0
      %p104 = por %p102, %p103
      %p105 = scmp.ne.s32.totalorder %s94, %s97
      %p106 = scmp.eq.s32.totalorder %s23, 1
      %p107 = por %p105, %p106
      %p108 = scmp.ne.s32.totalorder %s97, %s98
      %p109 = scmp.eq.s32.totalorder %s23, 0
      %p110 = por %p108, %p109
      %p111 = scmp.ne.s32.totalorder %s97, %s98
      %p112 = scmp.eq.s32.totalorder %s24, 1
      %p113 = por %p111, %p112
      %p115 = scmp.ne.s32.totalorder %s98, %s114
      %p116 = scmp.eq.s32.totalorder %s24, 0
      %p117 = por %p115, %p116
      %s118 = ssub.s32 %s25, %s37
      %s119 = ssub.s32 %s26, %s33
      %s120 = sor.u32 %s118, %s119
      %p121 = scmp.eq.s32.totalorder %s120, 0
      %s123 = sadd.s32 %s122, 1
      %s124 = scalar_select %p121, %s122, %s123
      %p127 = pneg %p121
      %p128 = scmp.eq.s32.totalorder %s18, 1
      %p129 = por %p127, %p128
      %p130 = scmp.ne.s32.totalorder %s122, %s125
      %p131 = scmp.eq.s32.totalorder %s18, 0
      %p132 = por %p130, %p131
      %p133 = scmp.ne.s32.totalorder %s122, %s125
      %p134 = scmp.eq.s32.totalorder %s23, 1
      %p135 = por %p133, %p134
      %p136 = scmp.ne.s32.totalorder %s125, %s126
      %p137 = scmp.eq.s32.totalorder %s23, 0
      %p138 = por %p136, %p137
      %p139 = scmp.ne.s32.totalorder %s125, %s126
      %p140 = scmp.eq.s32.totalorder %s24, 1
      %p141 = por %p139, %p140
      %p143 = scmp.ne.s32.totalorder %s126, %s142
      %p144 = scmp.eq.s32.totalorder %s24, 0
      %p145 = por %p143, %p144
      %p146 = scmp.le.s32.totalorder 1, %s18
      %p147 = scmp.lt.s32.totalorder %s18, 3
      %p148 = pnand %p146, %p147
      %p149 = pneg %p148
      // Predicated region
      $region9: #{tpu_custom_call.1} parent=5 // pred_check
        _
      $region10: #{tpu_custom_call.1} parent=5 // pred_check_branch
        %151 = sbr.rel (%p148) target = $region12
      $region11: #{tpu_custom_call.1} parent=5 // pred_region
        %s152 = ssub.s32 %s18, 1
      $region12: #{tpu_custom_call.1} parent=5 // pred_fallthru
        _
      %p153 = scmp.lt.s32.totalorder %s18, 2
      // Predicated region
      $region13: #{tpu_custom_call.1} parent=5 // pred_check
        %p154 = pneg %p153
      $region14: #{tpu_custom_call.1} parent=5 // pred_check_branch
        %156 = sbr.rel (%p154) target = $region16
      $region15: #{tpu_custom_call.1} parent=5 // pred_region
        // Predicated region
        $region17: #{tpu_custom_call.1} parent=15 // pred_check
          %p157 = pneg %p50
        $region18: #{tpu_custom_call.1} parent=15 // pred_check_branch
          %159 = sbr.rel (%p157) target = $region20
        $region19: #{tpu_custom_call.1} parent=15 // pred_region
          %s160 = sand.u32 %s40, 1
          %s161 = scalar_lea.sflag [#allocation3], %s160
          %s162 = sand.u32 %s40, 1
          %s163 = smul.addr %s162, 8
          %s164 = scalar_lea.vmem [#allocation2], %s163
          %166 = vsyncadd %s161, 0
          %s167 = smul.addr %s25, 8
          %s168 = scalar_lea.hbm %s0, %s167
          %s170 = sshll.u32 %s168, 4
          %s171 = int_to_ptr.hbm [resolvable:$true] %s170
          %s172 = sshll.u32 %s164, 4
          %s173 = int_to_ptr.vmem [resolvable:$true] %s172
          %175 = dma.hbm_to_vmem [thread:$0]  %s171, 128, %s173, %s161
        $region20: #{tpu_custom_call.1} parent=15 // pred_fallthru
          _
        // Predicated region
        $region21: #{tpu_custom_call.1} parent=15 // pred_check
          %p176 = pneg %p76
        $region22: #{tpu_custom_call.1} parent=15 // pred_check_branch
          %178 = sbr.rel (%p176) target = $region24
        $region23: #{tpu_custom_call.1} parent=15 // pred_region
          %s179 = sand.u32 %s18, 1
          %s180 = scalar_lea.sflag [#allocation6], %s179
          %s181 = sand.u32 %s66, 1
          %s182 = smul.addr %s181, 8
          %s183 = scalar_lea.vmem [#allocation5], %s182
          %185 = vsyncadd %s180, 0
          %s186 = smul.addr %s25, 8
          %s187 = scalar_lea.hbm %s1, %s186
          %s189 = sshll.u32 %s187, 4
          %s190 = int_to_ptr.hbm [resolvable:$true] %s189
          %s191 = sshll.u32 %s183, 4
          %s192 = int_to_ptr.vmem [resolvable:$true] %s191
          %194 = dma.hbm_to_vmem [thread:$0]  %s190, 128, %s192, %s180
        $region24: #{tpu_custom_call.1} parent=15 // pred_fallthru
          _
        // Predicated region
        $region25: #{tpu_custom_call.1} parent=15 // pred_check
          %p195 = pneg %p104
        $region26: #{tpu_custom_call.1} parent=15 // pred_check_branch
          %197 = sbr.rel (%p195) target = $region28
        $region27: #{tpu_custom_call.1} parent=15 // pred_region
          %s198 = sand.u32 %s18, 1
          %s199 = scalar_lea.sflag [#allocation6], %s198
          %s200 = sand.u32 %s94, 1
          %s201 = smul.addr %s200, 8
          %s202 = scalar_lea.vmem [#allocation7], %s201
          %204 = vsyncadd %s199, 0
          %s205 = sadd.s32 %s26, %s25
          %s206 = smul.addr %s205, 8
          %s207 = scalar_lea.hbm %s2, %s206
          %s209 = sshll.u32 %s207, 4
          %s210 = int_to_ptr.hbm [resolvable:$true] %s209
          %s211 = sshll.u32 %s202, 4
          %s212 = int_to_ptr.vmem [resolvable:$true] %s211
          %214 = dma.hbm_to_vmem [thread:$0]  %s210, 128, %s212, %s199
        $region28: #{tpu_custom_call.1} parent=15 // pred_fallthru
          _
      $region16: #{tpu_custom_call.1} parent=5 // pred_fallthru
        _
      %p215 = scmp.le.s32.totalorder 1, %s18
      %p216 = scmp.lt.s32.totalorder %s18, 3
      %p217 = pnand %p215, %p216
      %p218 = pneg %p217
      // Predicated region
      $region29: #{tpu_custom_call.1} parent=5 // pred_check
        _
      $region30: #{tpu_custom_call.1} parent=5 // pred_check_branch
        %220 = sbr.rel (%p217) target = $region32
      $region31: #{tpu_custom_call.1} parent=5 // pred_region
        %s221 = ssub.s32 %s18, 1
        %s222 = sand.u32 %s43, 1
        %s223 = scalar_lea.sflag [#allocation3], %s222
        %s224 = sand.u32 %s43, 1
        %s225 = smul.addr %s224, 8
        %s226 = scalar_lea.vmem [#allocation2], %s225
        // Predicated region
        $region33: #{tpu_custom_call.1} parent=31 // pred_check
          %p227 = pneg %p56
        $region34: #{tpu_custom_call.1} parent=31 // pred_check_branch
          %229 = sbr.rel (%p227) target = $region36
        $region35: #{tpu_custom_call.1} parent=31 // pred_region
          %231 = dma.done %s223, 128
        $region36: #{tpu_custom_call.1} parent=31 // pred_fallthru
          _
        %s232 = sand.u32 %s23, 1
        %s233 = scalar_lea.sflag [#allocation6], %s232
        %s234 = sand.u32 %s69, 1
        %s235 = smul.addr %s234, 8
        %s236 = scalar_lea.vmem [#allocation5], %s235
        // Predicated region
        $region37: #{tpu_custom_call.1} parent=31 // pred_check
          %p237 = pneg %p82
        $region38: #{tpu_custom_call.1} parent=31 // pred_check_branch
          %239 = sbr.rel (%p237) target = $region40
        $region39: #{tpu_custom_call.1} parent=31 // pred_region
          %241 = dma.done %s233, 128
        $region40: #{tpu_custom_call.1} parent=31 // pred_fallthru
          _
        %s242 = sand.u32 %s23, 1
        %s243 = scalar_lea.sflag [#allocation6], %s242
        %s244 = sand.u32 %s97, 1
        %s245 = smul.addr %s244, 8
        %s246 = scalar_lea.vmem [#allocation7], %s245
        // Predicated region
        $region41: #{tpu_custom_call.1} parent=31 // pred_check
          %p247 = pneg %p110
        $region42: #{tpu_custom_call.1} parent=31 // pred_check_branch
          %249 = sbr.rel (%p247) target = $region44
        $region43: #{tpu_custom_call.1} parent=31 // pred_region
          %251 = dma.done %s243, 128
        $region44: #{tpu_custom_call.1} parent=31 // pred_fallthru
          _
        %s252 = sand.u32 %s43, 1
        %s253 = scalar_lea.sflag [#allocation3], %s252
        %s254 = sand.u32 %s43, 1
        %s255 = smul.addr %s254, 8
        %s256 = scalar_lea.vmem [#allocation2], %s255
        %p257 = pneg %p56
        %p258 = pneg %p53
        %s259 = sand.u32 %s23, 1
        %s260 = scalar_lea.sflag [#allocation6], %s259
        %s261 = sand.u32 %s69, 1
        %s262 = smul.addr %s261, 8
        %s263 = scalar_lea.vmem [#allocation5], %s262
        %p264 = pneg %p82
        %p265 = pneg %p79
        %s266 = sand.u32 %s23, 1
        %s267 = scalar_lea.sflag [#allocation6], %s266
        %s268 = sand.u32 %s97, 1
        %s269 = smul.addr %s268, 8
        %s270 = scalar_lea.vmem [#allocation7], %s269
        %p271 = pneg %p110
        %p272 = pneg %p107
        %p273 = pneg %p138
        %p274 = pneg %p135
        %s275 = sand.u32 %s125, 1
        %s276 = scalar_lea.sflag [#allocation4], %s275
        %s277 = sand.u32 %s125, 1
        %s278 = smul.addr %s277, 8
        %s279 = scalar_lea.vmem [#allocation8], %s278
        %v280 = vld [vmem:[%s246] sm:$0xff]
        %v281 = vmul.f32 %v280, 0.17677669
        %v282 = vld [vmem:[%s226] sm:$0xff]
        %283 = vmatpush.xpose.msra.mxu0 0.0
        %284 = vmatpush.xpose.msra.mxu0 0.0
        %285 = vmatpush.xpose.msra.mxu0 0.0
        %286 = vmatpush.xpose.msra.mxu0 0.0
        %287 = vmatpush.xpose.msra.mxu0 0.0
        %288 = vmatpush.xpose.msra.mxu0 0.0
        %289 = vmatpush.xpose.msra.mxu0 0.0
        %290 = vmatpush.xpose.msra.mxu0 0.0
        %291 = vmatpush.xpose.msra.mxu0 0.0
        %292 = vmatpush.xpose.msra.mxu0 0.0
        %293 = vmatpush.xpose.msra.mxu0 0.0
        %294 = vmatpush.xpose.msra.mxu0 0.0
        %295 = vmatpush.xpose.msra.mxu0 0.0
        %296 = vmatpush.xpose.msra.mxu0 0.0
        %297 = vmatpush.xpose.msra.mxu0 0.0
        %298 = vmatpush.xpose.msra.mxu0 %v282
        %299 = vmatmul.f32.gmra.mxu0 %v281
        %v300 = vpop.f32.mrf.mxu0
        %v301 = vadd.f32 0.0, %v300
        %302 = vdwg.mxu0
        %vm303 = vcmask 64512
        %v304 = vsel %vm303, %v301, -inf
        %305 = vmax.xlane.f32.xlu0 %v304
        %v306 = vpop.xlane.xlu0 %305
        %v307 = vsub.f32 %v301, %v306
        %v308 = vmul.f32 %v307, 1.442695
        %v309 = vpow.pop %v308
        %v310 = vsel %vm303, %v309, 0.0
        %311 = vadd.xlane.f32.xlu0 %v310
        %v312 = vpop.xlane.xlu0 %311
        %v313 = vrcp.pop %v312
        %v314 = vld [vmem:[%s236] sm:$0xff]
        %v316 = vsel %vm303, %v309, 0
        %318 = vmatpush.msra.mxu0 0.0
        %319 = vmatpush.msra.mxu0 0.0
        %320 = vmatpush.msra.mxu0 0.0
        %321 = vmatpush.msra.mxu0 0.0
        %322 = vmatpush.msra.mxu0 0.0
        %323 = vmatpush.msra.mxu0 0.0
        %324 = vmatpush.msra.mxu0 0.0
        %325 = vmatpush.msra.mxu0 0.0
        %326 = vmatpush.msra.mxu0 0.0
        %327 = vmatpush.msra.mxu0 0.0
        %328 = vmatpush.msra.mxu0 0.0
        %329 = vmatpush.msra.mxu0 0.0
        %330 = vmatpush.msra.mxu0 0.0
        %331 = vmatpush.msra.mxu0 0.0
        %332 = vmatpush.msra.mxu0 0.0
        %333 = vmatpush.msra.mxu0 %v314
        %334 = vmatmul.f32.gmra.mxu0 %v316
        %v335 = vpop.f32.mrf.mxu0
        %v336 = vadd.f32 0.0, %v335
        %337 = vdwg.mxu0
        %v338 = vmul.f32 %v336, %v313
        %339 = vst [vmem:[%s279] sm:$0xff] %v338
        %s340 = sand.u32 %s125, 1
        %s341 = scalar_lea.sflag [#allocation4], %s340
        %s342 = sand.u32 %s125, 1
        %s343 = smul.addr %s342, 8
        %s344 = scalar_lea.vmem [#allocation8], %s343
        // Predicated region
        $region45: #{tpu_custom_call.1} parent=31 // pred_check
          %p345 = pneg %p135
        $region46: #{tpu_custom_call.1} parent=31 // pred_check_branch
          %347 = sbr.rel (%p345) target = $region48
        $region47: #{tpu_custom_call.1} parent=31 // pred_region
          %349 = vsyncadd %s341, 0
          %s350 = sadd.s32 %s28, %s27
          %s351 = smul.addr %s350, 8
          %s352 = scalar_lea.hbm %s3, %s351
          %s354 = sshll.u32 %s344, 4
          %s355 = int_to_ptr.vmem [resolvable:$true] %s354
          %s356 = sshll.u32 %s352, 4
          %s357 = int_to_ptr.hbm [resolvable:$true] %s356
          %359 = dma.vmem_to_hbm [thread:$0]  %s355, 128, %s357, %s341
        $region48: #{tpu_custom_call.1} parent=31 // pred_fallthru
          _
      $region32: #{tpu_custom_call.1} parent=5 // pred_fallthru
        _
      %p360 = scmp.le.s32.totalorder 2, %s18
      // Predicated region
      $region49: #{tpu_custom_call.1} parent=5 // pred_check
        %p361 = pneg %p360
      $region50: #{tpu_custom_call.1} parent=5 // pred_check_branch
        %363 = sbr.rel (%p361) target = $region52
      $region51: #{tpu_custom_call.1} parent=5 // pred_region
        %s364 = ssub.s32 %s18, 2
        // Predicated region
        $region53: #{tpu_custom_call.1} parent=51 // pred_check
          %p365 = pneg %p141
        $region54: #{tpu_custom_call.1} parent=51 // pred_check_branch
          %367 = sbr.rel (%p365) target = $region56
        $region55: #{tpu_custom_call.1} parent=51 // pred_region
          %s368 = sand.u32 %s126, 1
          %s369 = scalar_lea.sflag [#allocation4], %s368
          %s370 = sand.u32 %s126, 1
          %s371 = smul.addr %s370, 8
          %s372 = scalar_lea.vmem [#allocation8], %s371
          %374 = dma.done %s369, 128
        $region56: #{tpu_custom_call.1} parent=51 // pred_fallthru
          _
      $region52: #{tpu_custom_call.1} parent=5 // pred_fallthru
        _
    $region6: #{tpu_custom_call.1} parent=1 // loop_footer
      %s22 = sadd.s32 1, %s18
    $region7: #{tpu_custom_call.1} parent=1 // loop_footer_branch
      %17 = sbr.rel target = $region3
    $region8: #{tpu_custom_call.1} parent=1 // loop_exit
      _
    %375 = vsyncpa [#allocation3], 1
    %s376 = scalar_lea.sflag [#allocation3], 1
    %377 = vsyncpa %s376, 1
    %378 = vsyncpa [#allocation6], 1
    %s379 = scalar_lea.sflag [#allocation6], 1
    %380 = vsyncpa %s379, 1
    %381 = vsyncpa [#allocation4], 1
    %s382 = scalar_lea.sflag [#allocation4], 1
    %383 = vsyncpa %s382, 1

</llo_original>
